<compile_context>
chip_gen: v6e
topology: v6e:2x2x1
jax: 0.10.0
libtpu: 0.0.40
codegen_flags: <defaults>
</compile_context>

<pallas_src>
import jax
import jax.numpy as jnp
import numpy as np
from jax.experimental import pallas as pl
from jax.experimental.pallas import tpu as pltpu

# ------------------------------ configuration ------------------------------
IMAGE_DIM   = 8
IMAGE_CH    = 3
REPR_SIZES  = [4, 8]
KERNEL      = 3
LAYER_SIZES = [32]
LATENT      = 16

ODIM     = IMAGE_DIM - len(REPR_SIZES) * (KERNEL - 1)      # 8 -> 6 -> 4
NN_INPUT = ODIM * ODIM * REPR_SIZES[-1]                    # 4*4*8 = 128
PRE_OUT  = NN_INPUT
IN_FLAT  = IMAGE_CH * IMAGE_DIM * IMAGE_DIM                # 3*8*8 = 192


# ------------------------- fused forward-pass kernel ------------------------
def _fused_vae_kernel(x_ref, eps_ref,
                      wc1_ref, bc1_ref, wc2_ref, bc2_ref,
                      wms1_ref, bms1_ref, wms2_ref, bms2_ref,
                      wd1_ref, bd1_ref, wd2_ref, bd2_ref,
                      wdc1_ref, bdc1_ref, wdc2_ref, bdc2_ref,
                      recon_ref, mu_ref, sig_ref):
    def dense(a, w_ref, b_ref):
        return jnp.dot(a, w_ref[...], preferred_element_type=jnp.float32) + b_ref[...]

    relu = lambda v: jnp.maximum(v, 0.0)
    leaky = lambda v: jnp.where(v >= 0.0, v, 0.01 * v)       # nn.LeakyReLU default

    # encoder_conv (dense NCHW-flat matmuls), activators = [Tanh, ReLU]
    h = jnp.tanh(dense(x_ref[...], wc1_ref, bc1_ref))        # (B, 4*36)
    h = relu(dense(h, wc2_ref, bc2_ref))                     # (B, 8*16) == flat

    # encoder_NN_mu / encoder_NN_sig, fused (LeakyReLU hidden, Identity out)
    ms = leaky(dense(h, wms1_ref, bms1_ref))                 # (B, 2*32)
    ms = dense(ms, wms2_ref, bms2_ref)                       # (B, 2*LATENT)
    mu = ms[:, :LATENT]
    sig = ms[:, LATENT:]
    mu_ref[...] = mu
    sig_ref[...] = sig

    # reparametrization epilogue: z = mu + exp(0.5*logvar) * eps
    z = mu + jnp.exp(0.5 * sig) * eps_ref[...]

    # decoder_NN
    # TODO(synk): NeuralNet's default activators are not shown in the source;
    # ReLU-hidden / Identity-output is assumed.
    z = relu(dense(z, wd1_ref, bd1_ref))
    z = dense(z, wd2_ref, bd2_ref)                           # (B, NN_INPUT)

    # decoder_conv (dense NCHW-flat matmuls)
    # TODO(synk): b_decoder_conv source not shown; assumed stride-1
    # ConvTranspose2d mirror of the encoder with reversed activators.
    g = relu(dense(z, wdc1_ref, bdc1_ref))
    recon_ref[...] = jnp.tanh(dense(g, wdc2_ref, bdc2_ref))  # (B, IN_FLAT)


# --------------------- conv -> dense matrix (param prep) --------------------
def conv_as_matrix(w_oihw, H, W):
    """Valid, stride-1 Conv2d as a dense (Cin*H*W, Cout*Ho*Wo) matrix,
    NCHW-flatten ordering on both sides.  w_oihw: (Cout, Cin, K, K)."""
    Cout, Cin, K, _ = w_oihw.shape
    Ho, Wo = H - K + 1, W - K + 1
    r = jnp.arange(Ho)[:, None, None, None]
    c = jnp.arange(Wo)[None, :, None, None]
    a = jnp.arange(K)[None, None, :, None]
    b = jnp.arange(K)[None, None, None, :]
    pin = (r + a) * W + (c + b)                                  # (Ho,Wo,K,K)
    onehot = jax.nn.one_hot(pin, H * W, dtype=w_oihw.dtype)      # (Ho,Wo,K,K,HW)
    m = jnp.einsum('rcabp,oiab->iporc', onehot, w_oihw)          # (Cin,HW,Cout,Ho,Wo)
    return m.reshape(Cin * H * W, Cout * Ho * Wo)


def conv_transpose_as_matrix(w_iohw, Hi, Wi):
    """Stride-1, pad-0 ConvTranspose2d as a dense (Cin*Hi*Wi, Cout*Ho*Wo)
    matrix, NCHW-flatten ordering.  w_iohw: (Cin, Cout, K, K)."""
    Cin, Cout, K, _ = w_iohw.shape
    Ho, Wo = Hi + K - 1, Wi + K - 1
    i = jnp.arange(Hi)[:, None, None, None]
    j = jnp.arange(Wi)[None, :, None, None]
    a = jnp.arange(K)[None, None, :, None]
    b = jnp.arange(K)[None, None, None, :]
    pout = (i + a) * Wo + (j + b)                                # (Hi,Wi,K,K)
    onehot = jax.nn.one_hot(pout, Ho * Wo, dtype=w_iohw.dtype)   # (Hi,Wi,K,K,HoWo)
    m = jnp.einsum('rsabq,ioab->irsoq', onehot, w_iohw)          # (Cin,Hi,Wi,Cout,HoWo)
    return m.reshape(Cin * Hi * Wi, Cout * Ho * Wo)


# ------------------------------ parameters ---------------------------------
def init_params(key):
    keys = iter(jax.random.split(key, 64))

    def p(shape):
        return 0.1 * jax.random.normal(next(keys), shape, jnp.float32)

    def mlp(dims):
        ws = [p((dims[i], dims[i + 1])) for i in range(len(dims) - 1)]
        bs = [p((dims[i + 1],)) for i in range(len(dims) - 1)]
        return ws, bs

    params = {}
    enc_chs = [IMAGE_CH] + REPR_SIZES
    params["enc_conv_w"] = [p((enc_chs[i + 1], enc_chs[i], KERNEL, KERNEL))
                            for i in range(len(REPR_SIZES))]
    params["enc_conv_b"] = [p((enc_chs[i + 1],)) for i in range(len(REPR_SIZES))]

    params["mu_w"], params["mu_b"] = mlp([PRE_OUT] + LAYER_SIZES + [LATENT])
    params["sig_w"], params["sig_b"] = mlp([PRE_OUT] + LAYER_SIZES + [LATENT])
    params["dec_w"], params["dec_b"] = mlp([LATENT] + LAYER_SIZES[::-1] + [PRE_OUT])

    dec_chs = REPR_SIZES[::-1] + [IMAGE_CH]
    params["dec_conv_w"] = [p((dec_chs[i], dec_chs[i + 1], KERNEL, KERNEL))
                            for i in range(len(REPR_SIZES))]
    params["dec_conv_b"] = [p((dec_chs[i + 1],)) for i in range(len(REPR_SIZES))]
    return params


def prepare_params(params):
    """One-time weight transforms (run once, outside the hot path)."""
    K = KERNEL
    H0, H1, H2 = IMAGE_DIM, IMAGE_DIM - (K - 1), ODIM          # 8, 6, 4
    prep = {}
    # encoder convs -> dense matrices (+ channel-major broadcast biases)
    prep["wc1"] = conv_as_matrix(params["enc_conv_w"][0], H0, H0)
    prep["bc1"] = jnp.repeat(params["enc_conv_b"][0], H1 * H1)[None, :]
    prep["wc2"] = conv_as_matrix(params["enc_conv_w"][1], H1, H1)
    prep["bc2"] = jnp.repeat(params["enc_conv_b"][1], H2 * H2)[None, :]
    # mu/sig MLPs fused: layer-1 column-concat, layer-2 block-diagonal
    prep["wms1"] = jnp.concatenate([params["mu_w"][0], params["sig_w"][0]], axis=1)
    prep["bms1"] = jnp.concatenate([params["mu_b"][0], params["sig_b"][0]])[None, :]
    zblk = jnp.zeros_like(params["mu_w"][1])
    prep["wms2"] = jnp.concatenate(
        [jnp.concatenate([params["mu_w"][1], zblk], axis=1),
         jnp.concatenate([zblk, params["sig_w"][1]], axis=1)], axis=0)
    prep["bms2"] = jnp.concatenate([params["mu_b"][1], params["sig_b"][1]])[None, :]
    # decoder MLP (biases pre-shaped to (1, N))
    prep["wd1"], prep["bd1"] = params["dec_w"][0], params["dec_b"][0][None, :]
    prep["wd2"], prep["bd2"] = params["dec_w"][1], params["dec_b"][1][None, :]
    # decoder conv-transposes -> dense matrices
    prep["wdc1"] = conv_transpose_as_matrix(params["dec_conv_w"][0], H2, H2)
    prep["bdc1"] = jnp.repeat(params["dec_conv_b"][0], H1 * H1)[None, :]
    prep["wdc2"] = conv_transpose_as_matrix(params["dec_conv_w"][1], H1, H1)
    prep["bdc2"] = jnp.repeat(params["dec_conv_b"][1], H0 * H0)[None, :]
    return prep


# ------------------------------ forward pass --------------------------------
def forward(prep, x_nchw, eps):
    B = x_nchw.shape[0]
    x_flat = x_nchw.reshape(B, IN_FLAT)          # NCHW flatten == PyTorch .view(B,-1)
    w_keys = ("wc1", "bc1", "wc2", "bc2", "wms1", "bms1", "wms2", "bms2",
              "wd1", "bd1", "wd2", "bd2", "wdc1", "bdc1", "wdc2", "bdc2")
    weights = [prep[k] for k in w_keys]
    args = [x_flat, eps] + weights

    mm_flops = 2 * B * sum(int(w.shape[0]) * int(w.shape[1]) for w in weights[0::2])
    transcendentals = B * (int(prep["bc1"].shape[1]) + LATENT + int(prep["bdc2"].shape[1]))
    bytes_accessed = 4 * (sum(int(a.size) for a in args) + B * (IN_FLAT + 2 * LATENT))

    recon_flat, mu, sig = pl.pallas_call(
        _fused_vae_kernel,
        out_shape=(jax.ShapeDtypeStruct((B, IN_FLAT), jnp.float32),
                   jax.ShapeDtypeStruct((B, LATENT), jnp.float32),
                   jax.ShapeDtypeStruct((B, LATENT), jnp.float32)),
        in_specs=[pl.BlockSpec(memory_space=pltpu.MemorySpace.VMEM)] * len(args),
        out_specs=(pl.BlockSpec(memory_space=pltpu.MemorySpace.VMEM),) * 3,
        cost_estimate=pl.CostEstimate(flops=int(mm_flops),
                                      transcendentals=int(transcendentals),
                                      bytes_accessed=int(bytes_accessed)),
    )(*args)
    return recon_flat.reshape(B, IMAGE_CH, IMAGE_DIM, IMAGE_DIM), mu, sig


# -------------------- pure-JAX reference (correctness) ----------------------
def reference_forward(params, x_nchw, eps):
    relu = lambda v: jnp.maximum(v, 0.0)
    leaky = lambda v: jnp.where(v >= 0.0, v, 0.01 * v)
    dn = ("NCHW", "OIHW", "NCHW")
    conv_acts = [jnp.tanh, relu]

    h = x_nchw
    for i in range(len(REPR_SIZES)):
        h = jax.lax.conv_general_dilated(h, params["enc_conv_w"][i], (1, 1),
                                         "VALID", dimension_numbers=dn)
        h = conv_acts[i](h + params["enc_conv_b"][i][None, :, None, None])
    flat = h.reshape(h.shape[0], -1)

    def mlp(x, ws, bs, hidden_act):
        for j, (w, b) in enumerate(zip(ws, bs)):
            x = x @ w + b
            if j < len(ws) - 1:
                x = hidden_act(x)
        return x

    mu = mlp(flat, params["mu_w"], params["mu_b"], leaky)
    sig = mlp(flat, params["sig_w"], params["sig_b"], leaky)
    z = mu + jnp.exp(0.5 * sig) * eps
    z = mlp(z, params["dec_w"], params["dec_b"], relu)
    g = z.reshape(-1, REPR_SIZES[-1], ODIM, ODIM)

    dec_acts = conv_acts[::-1]
    for i in range(len(REPR_SIZES)):
        w = params["dec_conv_w"][i]                          # (Cin, Cout, K, K)
        wk = jnp.flip(jnp.swapaxes(w, 0, 1), axis=(2, 3))    # full conv, flipped kernel
        g = jax.lax.conv_general_dilated(
            g, wk, (1, 1), [(KERNEL - 1, KERNEL - 1)] * 2, dimension_numbers=dn)
        g = dec_acts[i](g + params["dec_conv_b"][i][None, :, None, None])
    return g, mu, sig


# ---------------------------------- main ------------------------------------
if __name__ == "__main__":
    key = jax.random.PRNGKey(0)
    pkey, xkey, nkey = jax.random.split(key, 3)

    params = init_params(pkey)
    prep = prepare_params(params)              # one-time weight transforms

    B = 8                                      # small; M >= sublane width (8)
    x = jax.random.normal(xkey, (B, IMAGE_CH, IMAGE_DIM, IMAGE_DIM), jnp.float32)
    eps = jax.random.normal(nkey, (B, LATENT), jnp.float32)

    fwd = jax.jit(forward)
    recon, mu, sig = fwd(prep, x, eps)
    jax.block_until_ready((recon, mu, sig))

    # correctness check against a pure-JAX reference of the original forward()
    ref_recon, ref_mu, ref_sig = reference_forward(params, x, eps)
    np.testing.assert_allclose(np.asarray(mu), np.asarray(ref_mu), rtol=5e-2, atol=5e-3)
    np.testing.assert_allclose(np.asarray(sig), np.asarray(ref_sig), rtol=5e-2, atol=5e-3)
    np.testing.assert_allclose(np.asarray(recon), np.asarray(ref_recon), rtol=5e-2, atol=5e-3)

    assert recon.shape == (B, IMAGE_CH, IMAGE_DIM, IMAGE_DIM), recon.shape
    assert mu.shape == (B, LATENT) and sig.shape == (B, LATENT)
    assert bool(jnp.all(jnp.isfinite(recon))) and bool(jnp.all(jnp.isfinite(mu)))

    print("KERNEL_OK")
</pallas_src>

<mosaic_0001>
module attributes {stable_mosaic.version = 11 : i64} {
  func.func @_fused_vae_kernel(%arg0: memref<8x192xf32, #tpu.memory_space<vmem>>, %arg1: memref<8x16xf32, #tpu.memory_space<vmem>>, %arg2: memref<192x144xf32, #tpu.memory_space<vmem>>, %arg3: memref<1x144xf32, #tpu.memory_space<vmem>>, %arg4: memref<144x128xf32, #tpu.memory_space<vmem>>, %arg5: memref<1x128xf32, #tpu.memory_space<vmem>>, %arg6: memref<128x64xf32, #tpu.memory_space<vmem>>, %arg7: memref<1x64xf32, #tpu.memory_space<vmem>>, %arg8: memref<64x32xf32, #tpu.memory_space<vmem>>, %arg9: memref<1x32xf32, #tpu.memory_space<vmem>>, %arg10: memref<16x32xf32, #tpu.memory_space<vmem>>, %arg11: memref<1x32xf32, #tpu.memory_space<vmem>>, %arg12: memref<32x128xf32, #tpu.memory_space<vmem>>, %arg13: memref<1x128xf32, #tpu.memory_space<vmem>>, %arg14: memref<128x144xf32, #tpu.memory_space<vmem>>, %arg15: memref<1x144xf32, #tpu.memory_space<vmem>>, %arg16: memref<144x192xf32, #tpu.memory_space<vmem>>, %arg17: memref<1x192xf32, #tpu.memory_space<vmem>>, %arg18: memref<8x192xf32, #tpu.memory_space<vmem>>, %arg19: memref<8x16xf32, #tpu.memory_space<vmem>>, %arg20: memref<8x16xf32, #tpu.memory_space<vmem>>) attributes {dimension_semantics = [], scalar_prefetch = 0 : i64, scratch_operands = 0 : i64, tpu.core_type = #tpu.core_type<tc>} {
    %c0 = arith.constant 0 : index
    %c0_0 = arith.constant 0 : index
    %0 = vector.load %arg0[%c0, %c0_0] : memref<8x192xf32, #tpu.memory_space<vmem>>, vector<8x192xf32>
    %c0_1 = arith.constant 0 : index
    %c0_2 = arith.constant 0 : index
    %1 = vector.load %arg2[%c0_1, %c0_2] : memref<192x144xf32, #tpu.memory_space<vmem>>, vector<192x144xf32>
    %cst = arith.constant dense<0.000000e+00> : vector<8x144xf32>
    %2 = tpu.matmul %0, %1, %cst {dimension_numbers = #tpu.dot_dimension_numbers<[1], [0], [0], [1], [0, 0, 1, 1], [], []>} : vector<8x192xf32>, vector<192x144xf32>, vector<8x144xf32> -> vector<8x144xf32>
    %c0_3 = arith.constant 0 : index
    %c0_4 = arith.constant 0 : index
    %3 = vector.load %arg3[%c0_3, %c0_4] : memref<1x144xf32, #tpu.memory_space<vmem>>, vector<1x144xf32>
    %4 = vector.broadcast %3 : vector<1x144xf32> to vector<8x144xf32>
    %5 = arith.addf %2, %4 : vector<8x144xf32>
    %6 = math.tanh %5 : vector<8x144xf32>
    %c0_5 = arith.constant 0 : index
    %c0_6 = arith.constant 0 : index
    %7 = vector.load %arg4[%c0_5, %c0_6] : memref<144x128xf32, #tpu.memory_space<vmem>>, vector<144x128xf32>
    %cst_7 = arith.constant dense<0.000000e+00> : vector<8x128xf32>
    %8 = tpu.matmul %6, %7, %cst_7 {dimension_numbers = #tpu.dot_dimension_numbers<[1], [0], [0], [1], [0, 0, 1, 1], [], []>} : vector<8x144xf32>, vector<144x128xf32>, vector<8x128xf32> -> vector<8x128xf32>
    %c0_8 = arith.constant 0 : index
    %c0_9 = arith.constant 0 : index
    %9 = vector.load %arg5[%c0_8, %c0_9] : memref<1x128xf32, #tpu.memory_space<vmem>>, vector<1x128xf32>
    %10 = vector.broadcast %9 : vector<1x128xf32> to vector<8x128xf32>
    %11 = arith.addf %8, %10 : vector<8x128xf32>
    %cst_10 = arith.constant 0.000000e+00 : f32
    %12 = vector.broadcast %cst_10 : f32 to vector<8x128xf32>
    %13 = arith.maximumf %11, %12 : vector<8x128xf32>
    %c0_11 = arith.constant 0 : index
    %c0_12 = arith.constant 0 : index
    %14 = vector.load %arg6[%c0_11, %c0_12] : memref<128x64xf32, #tpu.memory_space<vmem>>, vector<128x64xf32>
    %cst_13 = arith.constant dense<0.000000e+00> : vector<8x64xf32>
    %15 = tpu.matmul %13, %14, %cst_13 {dimension_numbers = #tpu.dot_dimension_numbers<[1], [0], [0], [1], [0, 0, 1, 1], [], []>} : vector<8x128xf32>, vector<128x64xf32>, vector<8x64xf32> -> vector<8x64xf32>
    %c0_14 = arith.constant 0 : index
    %c0_15 = arith.constant 0 : index
    %16 = vector.load %arg7[%c0_14, %c0_15] : memref<1x64xf32, #tpu.memory_space<vmem>>, vector<1x64xf32>
    %17 = vector.broadcast %16 : vector<1x64xf32> to vector<8x64xf32>
    %18 = arith.addf %15, %17 : vector<8x64xf32>
    %cst_16 = arith.constant 0.000000e+00 : f32
    %19 = vector.broadcast %cst_16 : f32 to vector<8x64xf32>
    %20 = arith.cmpf oge, %18, %19 : vector<8x64xf32>
    %cst_17 = arith.constant 0.00999999977 : f32
    %21 = vector.broadcast %cst_17 : f32 to vector<8x64xf32>
    %22 = arith.mulf %21, %18 : vector<8x64xf32>
    %23 = arith.select %20, %18, %22 : vector<8x64xi1>, vector<8x64xf32>
    %c0_18 = arith.constant 0 : index
    %c0_19 = arith.constant 0 : index
    %24 = vector.load %arg8[%c0_18, %c0_19] : memref<64x32xf32, #tpu.memory_space<vmem>>, vector<64x32xf32>
    %cst_20 = arith.constant dense<0.000000e+00> : vector<8x32xf32>
    %25 = tpu.matmul %23, %24, %cst_20 {dimension_numbers = #tpu.dot_dimension_numbers<[1], [0], [0], [1], [0, 0, 1, 1], [], []>} : vector<8x64xf32>, vector<64x32xf32>, vector<8x32xf32> -> vector<8x32xf32>
    %c0_21 = arith.constant 0 : index
    %c0_22 = arith.constant 0 : index
    %26 = vector.load %arg9[%c0_21, %c0_22] : memref<1x32xf32, #tpu.memory_space<vmem>>, vector<1x32xf32>
    %27 = vector.broadcast %26 : vector<1x32xf32> to vector<8x32xf32>
    %28 = arith.addf %25, %27 : vector<8x32xf32>
    %29 = vector.extract_strided_slice %28 {offsets = [0, 0], sizes = [8, 16], strides = [1, 1]} : vector<8x32xf32> to vector<8x16xf32>
    %30 = vector.extract_strided_slice %28 {offsets = [0, 16], sizes = [8, 16], strides = [1, 1]} : vector<8x32xf32> to vector<8x16xf32>
    %c0_23 = arith.constant 0 : index
    %c0_24 = arith.constant 0 : index
    %31 = vector.load %arg19[%c0_23, %c0_24] : memref<8x16xf32, #tpu.memory_space<vmem>>, vector<8x16xf32>
    tpu.vector_store %arg19[%c0_23, %c0_24], %29 {strides = array<i32>} : memref<8x16xf32, #tpu.memory_space<vmem>>, vector<8x16xf32>,
    %c0_25 = arith.constant 0 : index
    %c0_26 = arith.constant 0 : index
    %32 = vector.load %arg20[%c0_25, %c0_26] : memref<8x16xf32, #tpu.memory_space<vmem>>, vector<8x16xf32>
    tpu.vector_store %arg20[%c0_25, %c0_26], %30 {strides = array<i32>} : memref<8x16xf32, #tpu.memory_space<vmem>>, vector<8x16xf32>,
    %cst_27 = arith.constant 5.000000e-01 : f32
    %33 = vector.broadcast %cst_27 : f32 to vector<8x16xf32>
    %34 = arith.mulf %33, %30 : vector<8x16xf32>
    %35 = math.exp %34 : vector<8x16xf32>
    %c0_28 = arith.constant 0 : index
    %c0_29 = arith.constant 0 : index
    %36 = vector.load %arg1[%c0_28, %c0_29] : memref<8x16xf32, #tpu.memory_space<vmem>>, vector<8x16xf32>
    %37 = arith.mulf %35, %36 : vector<8x16xf32>
    %38 = arith.addf %29, %37 : vector<8x16xf32>
    %c0_30 = arith.constant 0 : index
    %c0_31 = arith.constant 0 : index
    %39 = vector.load %arg10[%c0_30, %c0_31] : memref<16x32xf32, #tpu.memory_space<vmem>>, vector<16x32xf32>
    %cst_32 = arith.constant dense<0.000000e+00> : vector<8x32xf32>
    %40 = tpu.matmul %38, %39, %cst_32 {dimension_numbers = #tpu.dot_dimension_numbers<[1], [0], [0], [1], [0, 0, 1, 1], [], []>} : vector<8x16xf32>, vector<16x32xf32>, vector<8x32xf32> -> vector<8x32xf32>
    %c0_33 = arith.constant 0 : index
    %c0_34 = arith.constant 0 : index
    %41 = vector.load %arg11[%c0_33, %c0_34] : memref<1x32xf32, #tpu.memory_space<vmem>>, vector<1x32xf32>
    %42 = vector.broadcast %41 : vector<1x32xf32> to vector<8x32xf32>
    %43 = arith.addf %40, %42 : vector<8x32xf32>
    %cst_35 = arith.constant 0.000000e+00 : f32
    %44 = vector.broadcast %cst_35 : f32 to vector<8x32xf32>
    %45 = arith.maximumf %43, %44 : vector<8x32xf32>
    %c0_36 = arith.constant 0 : index
    %c0_37 = arith.constant 0 : index
    %46 = vector.load %arg12[%c0_36, %c0_37] : memref<32x128xf32, #tpu.memory_space<vmem>>, vector<32x128xf32>
    %cst_38 = arith.constant dense<0.000000e+00> : vector<8x128xf32>
    %47 = tpu.matmul %45, %46, %cst_38 {dimension_numbers = #tpu.dot_dimension_numbers<[1], [0], [0], [1], [0, 0, 1, 1], [], []>} : vector<8x32xf32>, vector<32x128xf32>, vector<8x128xf32> -> vector<8x128xf32>
    %c0_39 = arith.constant 0 : index
    %c0_40 = arith.constant 0 : index
    %48 = vector.load %arg13[%c0_39, %c0_40] : memref<1x128xf32, #tpu.memory_space<vmem>>, vector<1x128xf32>
    %49 = vector.broadcast %48 : vector<1x128xf32> to vector<8x128xf32>
    %50 = arith.addf %47, %49 : vector<8x128xf32>
    %c0_41 = arith.constant 0 : index
    %c0_42 = arith.constant 0 : index
    %51 = vector.load %arg14[%c0_41, %c0_42] : memref<128x144xf32, #tpu.memory_space<vmem>>, vector<128x144xf32>
    %cst_43 = arith.constant dense<0.000000e+00> : vector<8x144xf32>
    %52 = tpu.matmul %50, %51, %cst_43 {dimension_numbers = #tpu.dot_dimension_numbers<[1], [0], [0], [1], [0, 0, 1, 1], [], []>} : vector<8x128xf32>, vector<128x144xf32>, vector<8x144xf32> -> vector<8x144xf32>
    %c0_44 = arith.constant 0 : index
    %c0_45 = arith.constant 0 : index
    %53 = vector.load %arg15[%c0_44, %c0_45] : memref<1x144xf32, #tpu.memory_space<vmem>>, vector<1x144xf32>
    %54 = vector.broadcast %53 : vector<1x144xf32> to vector<8x144xf32>
    %55 = arith.addf %52, %54 : vector<8x144xf32>
    %cst_46 = arith.constant 0.000000e+00 : f32
    %56 = vector.broadcast %cst_46 : f32 to vector<8x144xf32>
    %57 = arith.maximumf %55, %56 : vector<8x144xf32>
    %c0_47 = arith.constant 0 : index
    %c0_48 = arith.constant 0 : index
    %58 = vector.load %arg16[%c0_47, %c0_48] : memref<144x192xf32, #tpu.memory_space<vmem>>, vector<144x192xf32>
    %cst_49 = arith.constant dense<0.000000e+00> : vector<8x192xf32>
    %59 = tpu.matmul %57, %58, %cst_49 {dimension_numbers = #tpu.dot_dimension_numbers<[1], [0], [0], [1], [0, 0, 1, 1], [], []>} : vector<8x144xf32>, vector<144x192xf32>, vector<8x192xf32> -> vector<8x192xf32>
    %c0_50 = arith.constant 0 : index
    %c0_51 = arith.constant 0 : index
    %60 = vector.load %arg17[%c0_50, %c0_51] : memref<1x192xf32, #tpu.memory_space<vmem>>, vector<1x192xf32>
    %61 = vector.broadcast %60 : vector<1x192xf32> to vector<8x192xf32>
    %62 = arith.addf %59, %61 : vector<8x192xf32>
    %63 = math.tanh %62 : vector<8x192xf32>
    %c0_52 = arith.constant 0 : index
    %c0_53 = arith.constant 0 : index
    %64 = vector.load %arg18[%c0_52, %c0_53] : memref<8x192xf32, #tpu.memory_space<vmem>>, vector<8x192xf32>
    tpu.vector_store %arg18[%c0_52, %c0_53], %63 {strides = array<i32>} : memref<8x192xf32, #tpu.memory_space<vmem>>, vector<8x192xf32>,
    return
  }
}

</mosaic_0001>

<llo_original>
// kernel: forward.1
$region0: #{forward.1}
  #allocation0 [shape = 'u32[]', space=smem, size = 0x4, offset = 0x4, fixed_abs, tag = 'smem constant byte address 0x4 - core index']
  #allocation1 [shape = 'u32[144,128]{1,0:T(1,128)}', space=vmem, size = 0x12000, scoped, tag = 'internal scratch']
  %s0 = inlined_call_operand.vmem [shape: f32[8,192], index: 0, kind: input, shape index: {}]
  %s1 = inlined_call_operand.vmem [shape: f32[8,16], index: 1, kind: input, shape index: {}]
  %s2 = inlined_call_operand.vmem [shape: f32[192,144], index: 2, kind: input, shape index: {}]
  %s3 = inlined_call_operand.vmem [shape: f32[1,144], index: 3, kind: input, shape index: {}]
  %s4 = inlined_call_operand.vmem [shape: f32[144,128], index: 4, kind: input, shape index: {}]
  %s5 = inlined_call_operand.vmem [shape: f32[1,128], index: 5, kind: input, shape index: {}]
  %s6 = inlined_call_operand.vmem [shape: f32[128,64], index: 6, kind: input, shape index: {}]
  %s7 = inlined_call_operand.vmem [shape: f32[1,64], index: 7, kind: input, shape index: {}]
  %s8 = inlined_call_operand.vmem [shape: f32[64,32], index: 8, kind: input, shape index: {}]
  %s9 = inlined_call_operand.vmem [shape: f32[1,32], index: 9, kind: input, shape index: {}]
  %s10 = inlined_call_operand.vmem [shape: f32[16,32], index: 10, kind: input, shape index: {}]
  %s11 = inlined_call_operand.vmem [shape: f32[1,32], index: 11, kind: input, shape index: {}]
  %s12 = inlined_call_operand.vmem [shape: f32[32,128], index: 12, kind: input, shape index: {}]
  %s13 = inlined_call_operand.vmem [shape: f32[1,128], index: 13, kind: input, shape index: {}]
  %s14 = inlined_call_operand.vmem [shape: f32[128,144], index: 14, kind: input, shape index: {}]
  %s15 = inlined_call_operand.vmem [shape: f32[1,144], index: 15, kind: input, shape index: {}]
  %s16 = inlined_call_operand.vmem [shape: f32[144,192], index: 16, kind: input, shape index: {}]
  %s17 = inlined_call_operand.vmem [shape: f32[1,192], index: 17, kind: input, shape index: {}]
  %s18 = inlined_call_operand.vmem [shape: f32[8,192], index: 18, kind: output, shape index: {0}]
  %s19 = inlined_call_operand.hbm [shape: f32[8,16], index: 19, kind: output, shape index: {1}]
  %s20 = inlined_call_operand.hbm [shape: f32[8,16], index: 20, kind: output, shape index: {2}]
  %21 = xla_tuple %s18, %s19, %s20
  %s22 = sld [smem:[#allocation0]]
  $region98: #{forward.1} parent=0
    _
  %s24 = ssub.s32 1, %s22
  %s25 = scalar_select 0, %s24, %s22
  $region1: #{forward.1} parent=0
    #allocation2 [shape = 'u8[4096]{0}', space=vmem, size = 0x1000, scoped, tag = 'output window, operand 1, single buffered']
    #allocation3 [shape = 's32[1]{0}', space=sflag, size = 0x4, scoped, tag = 'scoped memory for forward.1']
    #allocation4 [shape = 'u8[4096]{0}', space=vmem, size = 0x1000, scoped, tag = 'output window, operand 2, single buffered']
    #allocation5 [shape = 's32[1]{0}', space=sflag, size = 0x4, scoped, tag = 'scoped memory for forward.1']
    %26 = vsyncpa [#allocation3], 0
    %27 = vsyncpa [#allocation5], 0
    // Predicated region
    $region2: #{forward.1} parent=1 // pred_check
      _
    $region3: #{forward.1} parent=1 // pred_check_branch
      %29 = sbr.rel (0) target = $region5
    $region4: #{forward.1} parent=1 // pred_region
      _
    $region5: #{forward.1} parent=1 // pred_fallthru
      _
    // Predicated region
    $region6: #{forward.1} parent=1 // pred_check
      _
    $region7: #{forward.1} parent=1 // pred_check_branch
      %31 = sbr.rel (0) target = $region9
    $region8: #{forward.1} parent=1 // pred_region
      _
    $region9: #{forward.1} parent=1 // pred_fallthru
      _
    // Predicated region
    $region10: #{forward.1} parent=1 // pred_check
      _
    $region11: #{forward.1} parent=1 // pred_check_branch
      %33 = sbr.rel (0) target = $region13
    $region12: #{forward.1} parent=1 // pred_region
      _
    $region13: #{forward.1} parent=1 // pred_fallthru
      _
    // Predicated region
    $region14: #{forward.1} parent=1 // pred_check
      _
    $region15: #{forward.1} parent=1 // pred_check_branch
      %35 = sbr.rel (0) target = $region17
    $region16: #{forward.1} parent=1 // pred_region
      _
    $region17: #{forward.1} parent=1 // pred_fallthru
      _
    // Predicated region
    $region18: #{forward.1} parent=1 // pred_check
      _
    $region19: #{forward.1} parent=1 // pred_check_branch
      %37 = sbr.rel (0) target = $region21
    $region20: #{forward.1} parent=1 // pred_region
      _
    $region21: #{forward.1} parent=1 // pred_fallthru
      _
    // Predicated region
    $region22: #{forward.1} parent=1 // pred_check
      _
    $region23: #{forward.1} parent=1 // pred_check_branch
      %39 = sbr.rel (0) target = $region25
    $region24: #{forward.1} parent=1 // pred_region
      _
    $region25: #{forward.1} parent=1 // pred_fallthru
      _
    // Predicated region
    $region26: #{forward.1} parent=1 // pred_check
      _
    $region27: #{forward.1} parent=1 // pred_check_branch
      %41 = sbr.rel (0) target = $region29
    $region28: #{forward.1} parent=1 // pred_region
      _
    $region29: #{forward.1} parent=1 // pred_fallthru
      _
    // Predicated region
    $region30: #{forward.1} parent=1 // pred_check
      _
    $region31: #{forward.1} parent=1 // pred_check_branch
      %43 = sbr.rel (0) target = $region33
    $region32: #{forward.1} parent=1 // pred_region
      _
    $region33: #{forward.1} parent=1 // pred_fallthru
      _
    // Predicated region
    $region34: #{forward.1} parent=1 // pred_check
      _
    $region35: #{forward.1} parent=1 // pred_check_branch
      %45 = sbr.rel (0) target = $region37
    $region36: #{forward.1} parent=1 // pred_region
      _
    $region37: #{forward.1} parent=1 // pred_fallthru
      _
    // Predicated region
    $region38: #{forward.1} parent=1 // pred_check
      _
    $region39: #{forward.1} parent=1 // pred_check_branch
      %47 = sbr.rel (0) target = $region41
    $region40: #{forward.1} parent=1 // pred_region
      _
    $region41: #{forward.1} parent=1 // pred_fallthru
      _
    // Predicated region
    $region42: #{forward.1} parent=1 // pred_check
      _
    $region43: #{forward.1} parent=1 // pred_check_branch
      %49 = sbr.rel (0) target = $region45
    $region44: #{forward.1} parent=1 // pred_region
      _
    $region45: #{forward.1} parent=1 // pred_fallthru
      _
    // Predicated region
    $region46: #{forward.1} parent=1 // pred_check
      _
    $region47: #{forward.1} parent=1 // pred_check_branch
      %51 = sbr.rel (0) target = $region49
    $region48: #{forward.1} parent=1 // pred_region
      _
    $region49: #{forward.1} parent=1 // pred_fallthru
      _
    // Predicated region
    $region50: #{forward.1} parent=1 // pred_check
      _
    $region51: #{forward.1} parent=1 // pred_check_branch
      %53 = sbr.rel (0) target = $region53
    $region52: #{forward.1} parent=1 // pred_region
      _
    $region53: #{forward.1} parent=1 // pred_fallthru
      _
    // Predicated region
    $region54: #{forward.1} parent=1 // pred_check
      _
    $region55: #{forward.1} parent=1 // pred_check_branch
      %55 = sbr.rel (0) target = $region57
    $region56: #{forward.1} parent=1 // pred_region
      _
    $region57: #{forward.1} parent=1 // pred_fallthru
      _
    // Predicated region
    $region58: #{forward.1} parent=1 // pred_check
      _
    $region59: #{forward.1} parent=1 // pred_check_branch
      %57 = sbr.rel (0) target = $region61
    $region60: #{forward.1} parent=1 // pred_region
      _
    $region61: #{forward.1} parent=1 // pred_fallthru
      _
    // Predicated region
    $region62: #{forward.1} parent=1 // pred_check
      _
    $region63: #{forward.1} parent=1 // pred_check_branch
      %59 = sbr.rel (0) target = $region65
    $region64: #{forward.1} parent=1 // pred_region
      _
    $region65: #{forward.1} parent=1 // pred_fallthru
      _
    // Predicated region
    $region66: #{forward.1} parent=1 // pred_check
      _
    $region67: #{forward.1} parent=1 // pred_check_branch
      %61 = sbr.rel (0) target = $region69
    $region68: #{forward.1} parent=1 // pred_region
      _
    $region69: #{forward.1} parent=1 // pred_fallthru
      _
    // Predicated region
    $region70: #{forward.1} parent=1 // pred_check
      _
    $region71: #{forward.1} parent=1 // pred_check_branch
      %63 = sbr.rel (0) target = $region73
    $region72: #{forward.1} parent=1 // pred_region
      _
    $region73: #{forward.1} parent=1 // pred_fallthru
      _
    %v64 = vld [vmem:[%s0] sm:$0xff]
    %v65 = vld [vmem:[%s0 + $0x8] sm:$0xff]
    %v66 = vld [vmem:[%s2] sm:$0xff]
    %v67 = vld [vmem:[%s2 + $0x8] sm:$0xff]
    %v68 = vld [vmem:[%s2 + $0x10] sm:$0xff]
    %v69 = vld [vmem:[%s2 + $0x18] sm:$0xff]
    %v70 = vld [vmem:[%s2 + $0x20] sm:$0xff]
    %v71 = vld [vmem:[%s2 + $0x28] sm:$0xff]
    %v72 = vld [vmem:[%s2 + $0x30] sm:$0xff]
    %v73 = vld [vmem:[%s2 + $0x38] sm:$0xff]
    %v74 = vld [vmem:[%s2 + $0x40] sm:$0xff]
    %v75 = vld [vmem:[%s2 + $0x48] sm:$0xff]
    %v76 = vld [vmem:[%s2 + $0x50] sm:$0xff]
    %v77 = vld [vmem:[%s2 + $0x58] sm:$0xff]
    %v78 = vld [vmem:[%s2 + $0x60] sm:$0xff]
    %v79 = vld [vmem:[%s2 + $0x68] sm:$0xff]
    %v80 = vld [vmem:[%s2 + $0x70] sm:$0xff]
    %v81 = vld [vmem:[%s2 + $0x78] sm:$0xff]
    %v82 = vld [vmem:[%s2 + $0x80] sm:$0xff]
    %v83 = vld [vmem:[%s2 + $0x88] sm:$0xff]
    %v84 = vld [vmem:[%s2 + $0x90] sm:$0xff]
    %v85 = vld [vmem:[%s2 + $0x98] sm:$0xff]
    %v86 = vld [vmem:[%s2 + $0xa0] sm:$0xff]
    %v87 = vld [vmem:[%s2 + $0xa8] sm:$0xff]
    %v88 = vld [vmem:[%s2 + $0xb0] sm:$0xff]
    %v89 = vld [vmem:[%s2 + $0xb8] sm:$0xff]
    %v90 = vld [vmem:[%s2 + $0xc0] sm:$0xff]
    %v91 = vld [vmem:[%s2 + $0xc8] sm:$0xff]
    %v92 = vld [vmem:[%s2 + $0xd0] sm:$0xff]
    %v93 = vld [vmem:[%s2 + $0xd8] sm:$0xff]
    %v94 = vld [vmem:[%s2 + $0xe0] sm:$0xff]
    %v95 = vld [vmem:[%s2 + $0xe8] sm:$0xff]
    %v96 = vld [vmem:[%s2 + $0xf0] sm:$0xff]
    %v97 = vld [vmem:[%s2 + $0xf8] sm:$0xff]
    %v98 = vld [vmem:[%s2 + $0x100] sm:$0xff]
    %v99 = vld [vmem:[%s2 + $0x108] sm:$0xff]
    %v100 = vld [vmem:[%s2 + $0x110] sm:$0xff]
    %v101 = vld [vmem:[%s2 + $0x118] sm:$0xff]
    %v102 = vld [vmem:[%s2 + $0x120] sm:$0xff]
    %v103 = vld [vmem:[%s2 + $0x128] sm:$0xff]
    %v104 = vld [vmem:[%s2 + $0x130] sm:$0xff]
    %v105 = vld [vmem:[%s2 + $0x138] sm:$0xff]
    %v106 = vld [vmem:[%s2 + $0x140] sm:$0xff]
    %v107 = vld [vmem:[%s2 + $0x148] sm:$0xff]
    %v108 = vld [vmem:[%s2 + $0x150] sm:$0xff]
    %v109 = vld [vmem:[%s2 + $0x158] sm:$0xff]
    %v110 = vld [vmem:[%s2 + $0x160] sm:$0xff]
    %v111 = vld [vmem:[%s2 + $0x168] sm:$0xff]
    %v112 = vld [vmem:[%s2 + $0x170] sm:$0xff]
    %v113 = vld [vmem:[%s2 + $0x178] sm:$0xff]
    %v114 = vld [vmem:[%s3] sm:$0x3]
    %v116 = vlaneseq
    %v117 = vshrl.u32 %v116, 7
    %v118 = vsub.s32 0, %v117
    %v119 = vrot.slane %v114, %v118
    %v120 = vlaneseq
    %v121 = vshrl.u32 %v120, 7
    %v122 = vsub.s32 1, %v121
    %v123 = vrot.slane %v114, %v122
    %vm126 = vcmask 523264
    %v128 = vsel %vm126, %v65, 0
    %130 = vmatprep.subr.mxu0 %v97
    %131 = vmatpush1.msra.mxu0 %v96
    %132 = vmatprep.subr.mxu0 %v95
    %133 = vmatpush1.msra.mxu0 %v94
    %134 = vmatprep.subr.mxu0 %v93
    %135 = vmatpush1.msra.mxu0 %v92
    %136 = vmatprep.subr.mxu0 %v91
    %137 = vmatpush1.msra.mxu0 %v90
    %138 = vmatprep.subr.mxu0 %v89
    %139 = vmatpush1.msra.mxu0 %v88
    %140 = vmatprep.subr.mxu0 %v87
    %141 = vmatpush1.msra.mxu0 %v86
    %142 = vmatprep.subr.mxu0 %v85
    %143 = vmatpush1.msra.mxu0 %v84
    %144 = vmatprep.subr.mxu0 %v83
    %145 = vmatpush1.msra.mxu0 %v82
    %146 = vmatprep.subr.mxu0 %v81
    %147 = vmatpush1.msra.mxu0 %v80
    %148 = vmatprep.subr.mxu0 %v79
    %149 = vmatpush1.msra.mxu0 %v78
    %150 = vmatprep.subr.mxu0 %v77
    %151 = vmatpush1.msra.mxu0 %v76
    %152 = vmatprep.subr.mxu0 %v75
    %153 = vmatpush1.msra.mxu0 %v74
    %154 = vmatprep.subr.mxu0 %v73
    %155 = vmatpush1.msra.mxu0 %v72
    %156 = vmatprep.subr.mxu0 %v71
    %157 = vmatpush1.msra.mxu0 %v70
    %158 = vmatprep.subr.mxu0 %v69
    %159 = vmatpush1.msra.mxu0 %v68
    %160 = vmatprep.subr.mxu0 %v67
    %161 = vmatpush1.msra.mxu0 %v66
    %162 = vmatprep.subr.mxu0 0.0
    %163 = vmatpush2.msra.mxu0 0.0
    %164 = vmatprep.subr.mxu0 0.0
    %165 = vmatpush2.msra.mxu0 0.0
    %166 = vmatprep.subr.mxu0 0.0
    %167 = vmatpush2.msra.mxu0 0.0
    %168 = vmatprep.subr.mxu0 0.0
    %169 = vmatpush2.msra.mxu0 0.0
    %170 = vmatprep.subr.mxu0 0.0
    %171 = vmatpush2.msra.mxu0 0.0
    %172 = vmatprep.subr.mxu0 0.0
    %173 = vmatpush2.msra.mxu0 0.0
    %174 = vmatprep.subr.mxu0 0.0
    %175 = vmatpush2.msra.mxu0 0.0
    %176 = vmatprep.subr.mxu0 0.0
    %177 = vmatpush2.msra.mxu0 0.0
    %178 = vmatprep.subr.mxu0 %v113
    %179 = vmatpush2.msra.mxu0 %v112
    %180 = vmatprep.subr.mxu0 %v111
    %181 = vmatpush2.msra.mxu0 %v110
    %182 = vmatprep.subr.mxu0 %v109
    %183 = vmatpush2.msra.mxu0 %v108
    %184 = vmatprep.subr.mxu0 %v107
    %185 = vmatpush2.msra.mxu0 %v106
    %186 = vmatprep.subr.mxu0 %v105
    %187 = vmatpush2.msra.mxu0 %v104
    %188 = vmatprep.subr.mxu0 %v103
    %189 = vmatpush2.msra.mxu0 %v102
    %190 = vmatprep.subr.mxu0 %v101
    %191 = vmatpush2.msra.mxu0 %v100
    %192 = vmatprep.subr.mxu0 %v99
    %193 = vmatpush2.msra.mxu0 %v98
    %194 = vmatprep.mubr.f32.mxu0 %v128
    %195 = vmatmul.mubr.f32.gmra.mxu0 %v64
    %v196 = vpop.f32.mrf.mxu0
    %v197 = vadd.f32 %v119, %v196
    %v198 = vpop.f32.mrf.mxu0
    %v199 = vadd.f32 %v123, %v198
    %200 = vdwg.mxu0
    %v201 = vtanh.pop %v197
    %v202 = vtanh.pop %v199
    %v203 = vld [vmem:[%s4] sm:$0xff]
    %v204 = vld [vmem:[%s4 + $0x8] sm:$0xff]
    %v205 = vld [vmem:[%s4 + $0x10] sm:$0xff]
    %v206 = vld [vmem:[%s4 + $0x18] sm:$0xff]
    %v207 = vld [vmem:[%s4 + $0x20] sm:$0xff]
    %v208 = vld [vmem:[%s4 + $0x28] sm:$0xff]
    %v209 = vld [vmem:[%s4 + $0x30] sm:$0xff]
    %v210 = vld [vmem:[%s4 + $0x38] sm:$0xff]
    %v211 = vld [vmem:[%s4 + $0x40] sm:$0xff]
    %v212 = vld [vmem:[%s4 + $0x48] sm:$0xff]
    %v213 = vld [vmem:[%s4 + $0x50] sm:$0xff]
    %v214 = vld [vmem:[%s4 + $0x58] sm:$0xff]
    %v215 = vld [vmem:[%s4 + $0x60] sm:$0xff]
    %v216 = vld [vmem:[%s4 + $0x68] sm:$0xff]
    %v217 = vld [vmem:[%s4 + $0x70] sm:$0xff]
    %v218 = vld [vmem:[%s4 + $0x78] sm:$0xff]
    %v219 = vld [vmem:[%s4 + $0x80] sm:$0xff]
    %v220 = vld [vmem:[%s4 + $0x88] sm:$0xff]
    %v221 = vld [vmem:[%s5] sm:$0x1]
    %v223 = vlaneseq
    %v224 = vshrl.u32 %v223, 7
    %v225 = vsub.s32 0, %v224
    %v226 = vrot.slane %v221, %v225
    %vm228 = vcmask 130048
    %v230 = vsel %vm228, %v202, 0
    %232 = vmatprep.subr.mxu0 0.0
    %233 = vmatpush1.msra.mxu0 %v218
    %234 = vmatprep.subr.mxu0 0.0
    %235 = vmatpush1.msra.mxu0 %v217
    %236 = vmatprep.subr.mxu0 0.0
    %237 = vmatpush1.msra.mxu0 %v216
    %238 = vmatprep.subr.mxu0 0.0
    %239 = vmatpush1.msra.mxu0 %v215
    %240 = vmatprep.subr.mxu0 0.0
    %241 = vmatpush1.msra.mxu0 %v214
    %242 = vmatprep.subr.mxu0 0.0
    %243 = vmatpush1.msra.mxu0 %v213
    %244 = vmatprep.subr.mxu0 0.0
    %245 = vmatpush1.msra.mxu0 %v212
    %246 = vmatprep.subr.mxu0 0.0
    %247 = vmatpush1.msra.mxu0 %v211
    %248 = vmatprep.subr.mxu0 0.0
    %249 = vmatpush1.msra.mxu0 %v210
    %250 = vmatprep.subr.mxu0 0.0
    %251 = vmatpush1.msra.mxu0 %v209
    %252 = vmatprep.subr.mxu0 0.0
    %253 = vmatpush1.msra.mxu0 %v208
    %254 = vmatprep.subr.mxu0 0.0
    %255 = vmatpush1.msra.mxu0 %v207
    %256 = vmatprep.subr.mxu0 0.0
    %257 = vmatpush1.msra.mxu0 %v206
    %258 = vmatprep.subr.mxu0 0.0
    %259 = vmatpush1.msra.mxu0 %v205
    %260 = vmatprep.subr.mxu0 0.0
    %261 = vmatpush1.msra.mxu0 %v204
    %262 = vmatprep.subr.mxu0 0.0
    %263 = vmatpush1.msra.mxu0 %v203
    %264 = vmatprep.subr.mxu0 0.0
    %265 = vmatpush2.msra.mxu0 0.0
    %266 = vmatprep.subr.mxu0 0.0
    %267 = vmatpush2.msra.mxu0 0.0
    %268 = vmatprep.subr.mxu0 0.0
    %269 = vmatpush2.msra.mxu0 0.0
    %270 = vmatprep.subr.mxu0 0.0
    %271 = vmatpush2.msra.mxu0 0.0
    %272 = vmatprep.subr.mxu0 0.0
    %273 = vmatpush2.msra.mxu0 0.0
    %274 = vmatprep.subr.mxu0 0.0
    %275 = vmatpush2.msra.mxu0 0.0
    %276 = vmatprep.subr.mxu0 0.0
    %277 = vmatpush2.msra.mxu0 0.0
    %278 = vmatprep.subr.mxu0 0.0
    %279 = vmatpush2.msra.mxu0 0.0
    %280 = vmatprep.subr.mxu0 0.0
    %281 = vmatpush2.msra.mxu0 0.0
    %282 = vmatprep.subr.mxu0 0.0
    %283 = vmatpush2.msra.mxu0 0.0
    %284 = vmatprep.subr.mxu0 0.0
    %285 = vmatpush2.msra.mxu0 0.0
    %286 = vmatprep.subr.mxu0 0.0
    %287 = vmatpush2.msra.mxu0 0.0
    %288 = vmatprep.subr.mxu0 0.0
    %289 = vmatpush2.msra.mxu0 0.0
    %290 = vmatprep.subr.mxu0 0.0
    %291 = vmatpush2.msra.mxu0 0.0
    %292 = vmatprep.subr.mxu0 0.0
    %293 = vmatpush2.msra.mxu0 %v220
    %294 = vmatprep.subr.mxu0 0.0
    %295 = vmatpush2.msra.mxu0 %v219
    %296 = vmatprep.mubr.f32.mxu0 %v230
    %297 = vmatmul.mubr.f32.gmra.mxu0 %v201
    %v298 = vpop.f32.mrf.mxu0
    %v299 = vadd.f32 %v226, %v298
    %v300 = vpop.f32.mrf.mxu0
    %301 = vdwg.mxu0
    %v302 = vmax.f32 %v299, 0.0
    %v303 = vld [vmem:[%s6] sm:$0xff]
    %v304 = vld [vmem:[%s6 + $0x8] sm:$0xff]
    %v305 = vld [vmem:[%s6 + $0x10] sm:$0xff]
    %v306 = vld [vmem:[%s6 + $0x18] sm:$0xff]
    %v307 = vld [vmem:[%s6 + $0x20] sm:$0xff]
    %v308 = vld [vmem:[%s6 + $0x28] sm:$0xff]
    %v309 = vld [vmem:[%s6 + $0x30] sm:$0xff]
    %v310 = vld [vmem:[%s6 + $0x38] sm:$0xff]
    %v311 = vld [vmem:[%s6 + $0x40] sm:$0xff]
    %v312 = vld [vmem:[%s6 + $0x48] sm:$0xff]
    %v313 = vld [vmem:[%s6 + $0x50] sm:$0xff]
    %v314 = vld [vmem:[%s6 + $0x58] sm:$0xff]
    %v315 = vld [vmem:[%s6 + $0x60] sm:$0xff]
    %v316 = vld [vmem:[%s6 + $0x68] sm:$0xff]
    %v317 = vld [vmem:[%s6 + $0x70] sm:$0xff]
    %v318 = vld [vmem:[%s6 + $0x78] sm:$0xff]
    %v319 = vld [vmem:[%s7] sm:$0x1]
    %v321 = vlaneseq
    %v322 = vshrl.u32 %v321, 7
    %v323 = vsub.s32 0, %v322
    %v324 = vrot.slane %v319, %v323
    %326 = vmatprep.subr.mxu0 0.0
    %327 = vmatpush1.msra.mxu0 %v318
    %328 = vmatprep.subr.mxu0 0.0
    %329 = vmatpush1.msra.mxu0 %v317
    %330 = vmatprep.subr.mxu0 0.0
    %331 = vmatpush1.msra.mxu0 %v316
    %332 = vmatprep.subr.mxu0 0.0
    %333 = vmatpush1.msra.mxu0 %v315
    %334 = vmatprep.subr.mxu0 0.0
    %335 = vmatpush1.msra.mxu0 %v314
    %336 = vmatprep.subr.mxu0 0.0
    %337 = vmatpush1.msra.mxu0 %v313
    %338 = vmatprep.subr.mxu0 0.0
    %339 = vmatpush1.msra.mxu0 %v312
    %340 = vmatprep.subr.mxu0 0.0
    %341 = vmatpush1.msra.mxu0 %v311
    %342 = vmatprep.subr.mxu0 0.0
    %343 = vmatpush1.msra.mxu0 %v310
    %344 = vmatprep.subr.mxu0 0.0
    %345 = vmatpush1.msra.mxu0 %v309
    %346 = vmatprep.subr.mxu0 0.0
    %347 = vmatpush1.msra.mxu0 %v308
    %348 = vmatprep.subr.mxu0 0.0
    %349 = vmatpush1.msra.mxu0 %v307
    %350 = vmatprep.subr.mxu0 0.0
    %351 = vmatpush1.msra.mxu0 %v306
    %352 = vmatprep.subr.mxu0 0.0
    %353 = vmatpush1.msra.mxu0 %v305
    %354 = vmatprep.subr.mxu0 0.0
    %355 = vmatpush1.msra.mxu0 %v304
    %356 = vmatprep.subr.mxu0 0.0
    %357 = vmatpush1.msra.mxu0 %v303
    %358 = vmatprep.subr.mxu0 0.0
    %359 = vmatpush2.msra.mxu0 0.0
    %360 = vmatprep.subr.mxu0 0.0
    %361 = vmatpush2.msra.mxu0 0.0
    %362 = vmatprep.subr.mxu0 0.0
    %363 = vmatpush2.msra.mxu0 0.0
    %364 = vmatprep.subr.mxu0 0.0
    %365 = vmatpush2.msra.mxu0 0.0
    %366 = vmatprep.subr.mxu0 0.0
    %367 = vmatpush2.msra.mxu0 0.0
    %368 = vmatprep.subr.mxu0 0.0
    %369 = vmatpush2.msra.mxu0 0.0
    %370 = vmatprep.subr.mxu0 0.0
    %371 = vmatpush2.msra.mxu0 0.0
    %372 = vmatprep.subr.mxu0 0.0
    %373 = vmatpush2.msra.mxu0 0.0
    %374 = vmatprep.subr.mxu0 0.0
    %375 = vmatpush2.msra.mxu0 0.0
    %376 = vmatprep.subr.mxu0 0.0
    %377 = vmatpush2.msra.mxu0 0.0
    %378 = vmatprep.subr.mxu0 0.0
    %379 = vmatpush2.msra.mxu0 0.0
    %380 = vmatprep.subr.mxu0 0.0
    %381 = vmatpush2.msra.mxu0 0.0
    %382 = vmatprep.subr.mxu0 0.0
    %383 = vmatpush2.msra.mxu0 0.0
    %384 = vmatprep.subr.mxu0 0.0
    %385 = vmatpush2.msra.mxu0 0.0
    %386 = vmatprep.subr.mxu0 0.0
    %387 = vmatpush2.msra.mxu0 0.0
    %388 = vmatprep.subr.mxu0 0.0
    %389 = vmatpush2.msra.mxu0 0.0
    %390 = vmatprep.mubr.f32.mxu0 0.0
    %391 = vmatmul.mubr.f32.gmra.mxu0 %v302
    %v392 = vpop.f32.mrf.mxu0
    %v393 = vadd.f32 %v324, %v392
    %v394 = vpop.f32.mrf.mxu0
    %395 = vdwg.mxu0
    %vm396 = vcmp.ge.f32.partialorder %v393, 0.0
    %v397 = vmul.f32 %v393, 0.01
    %v398 = vsel %vm396, %v393, %v397
    %v399 = vld [vmem:[%s8] sm:$0xff]
    %v400 = vld [vmem:[%s8 + $0x8] sm:$0xff]
    %v401 = vld [vmem:[%s8 + $0x10] sm:$0xff]
    %v402 = vld [vmem:[%s8 + $0x18] sm:$0xff]
    %v403 = vld [vmem:[%s8 + $0x20] sm:$0xff]
    %v404 = vld [vmem:[%s8 + $0x28] sm:$0xff]
    %v405 = vld [vmem:[%s8 + $0x30] sm:$0xff]
    %v406 = vld [vmem:[%s8 + $0x38] sm:$0xff]
    %v407 = vld [vmem:[%s9] sm:$0x1]
    %v409 = vlaneseq
    %v410 = vshrl.u32 %v409, 7
    %v411 = vsub.s32 0, %v410
    %v412 = vrot.slane %v407, %v411
    %v415 = vsel %vm126, %v398, 0
    %417 = vmatprep.subr.mxu0 0.0
    %418 = vmatpush1.msra.mxu0 0.0
    %419 = vmatprep.subr.mxu0 0.0
    %420 = vmatpush1.msra.mxu0 0.0
    %421 = vmatprep.subr.mxu0 0.0
    %422 = vmatpush1.msra.mxu0 0.0
    %423 = vmatprep.subr.mxu0 0.0
    %424 = vmatpush1.msra.mxu0 0.0
    %425 = vmatprep.subr.mxu0 0.0
    %426 = vmatpush1.msra.mxu0 0.0
    %427 = vmatprep.subr.mxu0 0.0
    %428 = vmatpush1.msra.mxu0 0.0
    %429 = vmatprep.subr.mxu0 0.0
    %430 = vmatpush1.msra.mxu0 0.0
    %431 = vmatprep.subr.mxu0 0.0
    %432 = vmatpush1.msra.mxu0 0.0
    %433 = vmatprep.subr.mxu0 0.0
    %434 = vmatpush1.msra.mxu0 %v406
    %435 = vmatprep.subr.mxu0 0.0
    %436 = vmatpush1.msra.mxu0 %v405
    %437 = vmatprep.subr.mxu0 0.0
    %438 = vmatpush1.msra.mxu0 %v404
    %439 = vmatprep.subr.mxu0 0.0
    %440 = vmatpush1.msra.mxu0 %v403
    %441 = vmatprep.subr.mxu0 0.0
    %442 = vmatpush1.msra.mxu0 %v402
    %443 = vmatprep.subr.mxu0 0.0
    %444 = vmatpush1.msra.mxu0 %v401
    %445 = vmatprep.subr.mxu0 0.0
    %446 = vmatpush1.msra.mxu0 %v400
    %447 = vmatprep.subr.mxu0 0.0
    %448 = vmatpush1.msra.mxu0 %v399
    %449 = vmatprep.subr.mxu0 0.0
    %450 = vmatpush2.msra.mxu0 0.0
    %451 = vmatprep.subr.mxu0 0.0
    %452 = vmatpush2.msra.mxu0 0.0
    %453 = vmatprep.subr.mxu0 0.0
    %454 = vmatpush2.msra.mxu0 0.0
    %455 = vmatprep.subr.mxu0 0.0
    %456 = vmatpush2.msra.mxu0 0.0
    %457 = vmatprep.subr.mxu0 0.0
    %458 = vmatpush2.msra.mxu0 0.0
    %459 = vmatprep.subr.mxu0 0.0
    %460 = vmatpush2.msra.mxu0 0.0
    %461 = vmatprep.subr.mxu0 0.0
    %462 = vmatpush2.msra.mxu0 0.0
    %463 = vmatprep.subr.mxu0 0.0
    %464 = vmatpush2.msra.mxu0 0.0
    %465 = vmatprep.subr.mxu0 0.0
    %466 = vmatpush2.msra.mxu0 0.0
    %467 = vmatprep.subr.mxu0 0.0
    %468 = vmatpush2.msra.mxu0 0.0
    %469 = vmatprep.subr.mxu0 0.0
    %470 = vmatpush2.msra.mxu0 0.0
    %471 = vmatprep.subr.mxu0 0.0
    %472 = vmatpush2.msra.mxu0 0.0
    %473 = vmatprep.subr.mxu0 0.0
    %474 = vmatpush2.msra.mxu0 0.0
    %475 = vmatprep.subr.mxu0 0.0
    %476 = vmatpush2.msra.mxu0 0.0
    %477 = vmatprep.subr.mxu0 0.0
    %478 = vmatpush2.msra.mxu0 0.0
    %479 = vmatprep.subr.mxu0 0.0
    %480 = vmatpush2.msra.mxu0 0.0
    %481 = vmatprep.mubr.f32.mxu0 0.0
    %482 = vmatmul.mubr.f32.gmra.mxu0 %v415
    %v483 = vpop.f32.mrf.mxu0
    %v484 = vadd.f32 %v412, %v483
    %v485 = vpop.f32.mrf.mxu0
    %486 = vdwg.mxu0
    %487 = vst.msk [vmem:[#allocation2] sm:$0xff] %vm228, %v484
    %489 = vrot.lane.b32.xlu0 %v484, 112
    %v490 = vpop.permute.xlu0 %489
    %492 = vst.msk [vmem:[#allocation4] sm:$0xff] %vm228, %v490
    %v493 = vmul.f32 %v484, 0.5
    %v494 = vmul.f32 %v493, 1.442695
    %v495 = vpow.pop %v494
    %v496 = vld [vmem:[%s1] sm:$0xff]
    %498 = vrot.lane.b32.xlu0 %v496, 16
    %v499 = vpop.permute.xlu0 %498
    %v501 = vmul.f32 %v495, %v499
    %503 = vrot.lane.b32.xlu0 %v501, 112
    %v504 = vpop.permute.xlu0 %503
    %v506 = vadd.f32 %v484, %v504
    %v507 = vld [vmem:[%s10] sm:$0xff]
    %v508 = vld [vmem:[%s10 + $0x8] sm:$0xff]
    %v509 = vld [vmem:[%s11] sm:$0x1]
    %v511 = vlaneseq
    %v512 = vshrl.u32 %v511, 7
    %v513 = vsub.s32 0, %v512
    %v514 = vrot.slane %v509, %v513
    %v517 = vsel %vm228, %v506, 0
    %519 = vmatprep.subr.mxu0 0.0
    %520 = vmatpush1.msra.mxu0 0.0
    %521 = vmatprep.subr.mxu0 0.0
    %522 = vmatpush1.msra.mxu0 0.0
    %523 = vmatprep.subr.mxu0 0.0
    %524 = vmatpush1.msra.mxu0 0.0
    %525 = vmatprep.subr.mxu0 0.0
    %526 = vmatpush1.msra.mxu0 0.0
    %527 = vmatprep.subr.mxu0 0.0
    %528 = vmatpush1.msra.mxu0 0.0
    %529 = vmatprep.subr.mxu0 0.0
    %530 = vmatpush1.msra.mxu0 0.0
    %531 = vmatprep.subr.mxu0 0.0
    %532 = vmatpush1.msra.mxu0 0.0
    %533 = vmatprep.subr.mxu0 0.0
    %534 = vmatpush1.msra.mxu0 0.0
    %535 = vmatprep.subr.mxu0 0.0
    %536 = vmatpush1.msra.mxu0 0.0
    %537 = vmatprep.subr.mxu0 0.0
    %538 = vmatpush1.msra.mxu0 0.0
    %539 = vmatprep.subr.mxu0 0.0
    %540 = vmatpush1.msra.mxu0 0.0
    %541 = vmatprep.subr.mxu0 0.0
    %542 = vmatpush1.msra.mxu0 0.0
    %543 = vmatprep.subr.mxu0 0.0
    %544 = vmatpush1.msra.mxu0 0.0
    %545 = vmatprep.subr.mxu0 0.0
    %546 = vmatpush1.msra.mxu0 0.0
    %547 = vmatprep.subr.mxu0 0.0
    %548 = vmatpush1.msra.mxu0 %v508
    %549 = vmatprep.subr.mxu0 0.0
    %550 = vmatpush1.msra.mxu0 %v507
    %551 = vmatprep.subr.mxu0 0.0
    %552 = vmatpush2.msra.mxu0 0.0
    %553 = vmatprep.subr.mxu0 0.0
    %554 = vmatpush2.msra.mxu0 0.0
    %555 = vmatprep.subr.mxu0 0.0
    %556 = vmatpush2.msra.mxu0 0.0
    %557 = vmatprep.subr.mxu0 0.0
    %558 = vmatpush2.msra.mxu0 0.0
    %559 = vmatprep.subr.mxu0 0.0
    %560 = vmatpush2.msra.mxu0 0.0
    %561 = vmatprep.subr.mxu0 0.0
    %562 = vmatpush2.msra.mxu0 0.0
    %563 = vmatprep.subr.mxu0 0.0
    %564 = vmatpush2.msra.mxu0 0.0
    %565 = vmatprep.subr.mxu0 0.0
    %566 = vmatpush2.msra.mxu0 0.0
    %567 = vmatprep.subr.mxu0 0.0
    %568 = vmatpush2.msra.mxu0 0.0
    %569 = vmatprep.subr.mxu0 0.0
    %570 = vmatpush2.msra.mxu0 0.0
    %571 = vmatprep.subr.mxu0 0.0
    %572 = vmatpush2.msra.mxu0 0.0
    %573 = vmatprep.subr.mxu0 0.0
    %574 = vmatpush2.msra.mxu0 0.0
    %575 = vmatprep.subr.mxu0 0.0
    %576 = vmatpush2.msra.mxu0 0.0
    %577 = vmatprep.subr.mxu0 0.0
    %578 = vmatpush2.msra.mxu0 0.0
    %579 = vmatprep.subr.mxu0 0.0
    %580 = vmatpush2.msra.mxu0 0.0
    %581 = vmatprep.subr.mxu0 0.0
    %582 = vmatpush2.msra.mxu0 0.0
    %583 = vmatprep.mubr.f32.mxu0 0.0
    %584 = vmatmul.mubr.f32.gmra.mxu0 %v517
    %v585 = vpop.f32.mrf.mxu0
    %v586 = vadd.f32 %v514, %v585
    %v587 = vpop.f32.mrf.mxu0
    %588 = vdwg.mxu0
    %v589 = vmax.f32 %v586, 0.0
    %v590 = vld [vmem:[%s12] sm:$0xff]
    %v591 = vld [vmem:[%s12 + $0x8] sm:$0xff]
    %v592 = vld [vmem:[%s12 + $0x10] sm:$0xff]
    %v593 = vld [vmem:[%s12 + $0x18] sm:$0xff]
    %v594 = vld [vmem:[%s13] sm:$0x1]
    %v596 = vlaneseq
    %v597 = vshrl.u32 %v596, 7
    %v598 = vsub.s32 0, %v597
    %v599 = vrot.slane %v594, %v598
    %vm601 = vcmask 261120
    %v603 = vsel %vm601, %v589, 0
    %605 = vmatprep.subr.mxu0 0.0
    %606 = vmatpush1.msra.mxu0 0.0
    %607 = vmatprep.subr.mxu0 0.0
    %608 = vmatpush1.msra.mxu0 0.0
    %609 = vmatprep.subr.mxu0 0.0
    %610 = vmatpush1.msra.mxu0 0.0
    %611 = vmatprep.subr.mxu0 0.0
    %612 = vmatpush1.msra.mxu0 0.0
    %613 = vmatprep.subr.mxu0 0.0
    %614 = vmatpush1.msra.mxu0 0.0
    %615 = vmatprep.subr.mxu0 0.0
    %616 = vmatpush1.msra.mxu0 0.0
    %617 = vmatprep.subr.mxu0 0.0
    %618 = vmatpush1.msra.mxu0 0.0
    %619 = vmatprep.subr.mxu0 0.0
    %620 = vmatpush1.msra.mxu0 0.0
    %621 = vmatprep.subr.mxu0 0.0
    %622 = vmatpush1.msra.mxu0 0.0
    %623 = vmatprep.subr.mxu0 0.0
    %624 = vmatpush1.msra.mxu0 0.0
    %625 = vmatprep.subr.mxu0 0.0
    %626 = vmatpush1.msra.mxu0 0.0
    %627 = vmatprep.subr.mxu0 0.0
    %628 = vmatpush1.msra.mxu0 0.0
    %629 = vmatprep.subr.mxu0 0.0
    %630 = vmatpush1.msra.mxu0 %v593
    %631 = vmatprep.subr.mxu0 0.0
    %632 = vmatpush1.msra.mxu0 %v592
    %633 = vmatprep.subr.mxu0 0.0
    %634 = vmatpush1.msra.mxu0 %v591
    %635 = vmatprep.subr.mxu0 0.0
    %636 = vmatpush1.msra.mxu0 %v590
    %637 = vmatprep.subr.mxu0 0.0
    %638 = vmatpush2.msra.mxu0 0.0
    %639 = vmatprep.subr.mxu0 0.0
    %640 = vmatpush2.msra.mxu0 0.0
    %641 = vmatprep.subr.mxu0 0.0
    %642 = vmatpush2.msra.mxu0 0.0
    %643 = vmatprep.subr.mxu0 0.0
    %644 = vmatpush2.msra.mxu0 0.0
    %645 = vmatprep.subr.mxu0 0.0
    %646 = vmatpush2.msra.mxu0 0.0
    %647 = vmatprep.subr.mxu0 0.0
    %648 = vmatpush2.msra.mxu0 0.0
    %649 = vmatprep.subr.mxu0 0.0
    %650 = vmatpush2.msra.mxu0 0.0
    %651 = vmatprep.subr.mxu0 0.0
    %652 = vmatpush2.msra.mxu0 0.0
    %653 = vmatprep.subr.mxu0 0.0
    %654 = vmatpush2.msra.mxu0 0.0
    %655 = vmatprep.subr.mxu0 0.0
    %656 = vmatpush2.msra.mxu0 0.0
    %657 = vmatprep.subr.mxu0 0.0
    %658 = vmatpush2.msra.mxu0 0.0
    %659 = vmatprep.subr.mxu0 0.0
    %660 = vmatpush2.msra.mxu0 0.0
    %661 = vmatprep.subr.mxu0 0.0
    %662 = vmatpush2.msra.mxu0 0.0
    %663 = vmatprep.subr.mxu0 0.0
    %664 = vmatpush2.msra.mxu0 0.0
    %665 = vmatprep.subr.mxu0 0.0
    %666 = vmatpush2.msra.mxu0 0.0
    %667 = vmatprep.subr.mxu0 0.0
    %668 = vmatpush2.msra.mxu0 0.0
    %669 = vmatprep.mubr.f32.mxu0 0.0
    %670 = vmatmul.mubr.f32.gmra.mxu0 %v603
    %v671 = vpop.f32.mrf.mxu0
    %v672 = vadd.f32 %v599, %v671
    %v673 = vpop.f32.mrf.mxu0
    %674 = vdwg.mxu0
    %v675 = vld [vmem:[%s14] sm:$0xff]
    %v676 = vld [vmem:[%s14 + $0x8] sm:$0xff]
    %v677 = vld [vmem:[%s14 + $0x10] sm:$0xff]
    %v678 = vld [vmem:[%s14 + $0x18] sm:$0xff]
    %v679 = vld [vmem:[%s14 + $0x20] sm:$0xff]
    %v680 = vld [vmem:[%s14 + $0x28] sm:$0xff]
    %v681 = vld [vmem:[%s14 + $0x30] sm:$0xff]
    %v682 = vld [vmem:[%s14 + $0x38] sm:$0xff]
    %v683 = vld [vmem:[%s14 + $0x40] sm:$0xff]
    %v684 = vld [vmem:[%s14 + $0x48] sm:$0xff]
    %v685 = vld [vmem:[%s14 + $0x50] sm:$0xff]
    %v686 = vld [vmem:[%s14 + $0x58] sm:$0xff]
    %v687 = vld [vmem:[%s14 + $0x60] sm:$0xff]
    %v688 = vld [vmem:[%s14 + $0x68] sm:$0xff]
    %v689 = vld [vmem:[%s14 + $0x70] sm:$0xff]
    %v690 = vld [vmem:[%s14 + $0x78] sm:$0xff]
    %v691 = vld [vmem:[%s14 + $0x80] sm:$0xff]
    %v692 = vld [vmem:[%s14 + $0x88] sm:$0xff]
    %v693 = vld [vmem:[%s14 + $0x90] sm:$0xff]
    %v694 = vld [vmem:[%s14 + $0x98] sm:$0xff]
    %v695 = vld [vmem:[%s14 + $0xa0] sm:$0xff]
    %v696 = vld [vmem:[%s14 + $0xa8] sm:$0xff]
    %v697 = vld [vmem:[%s14 + $0xb0] sm:$0xff]
    %v698 = vld [vmem:[%s14 + $0xb8] sm:$0xff]
    %v699 = vld [vmem:[%s14 + $0xc0] sm:$0xff]
    %v700 = vld [vmem:[%s14 + $0xc8] sm:$0xff]
    %v701 = vld [vmem:[%s14 + $0xd0] sm:$0xff]
    %v702 = vld [vmem:[%s14 + $0xd8] sm:$0xff]
    %v703 = vld [vmem:[%s14 + $0xe0] sm:$0xff]
    %v704 = vld [vmem:[%s14 + $0xe8] sm:$0xff]
    %v705 = vld [vmem:[%s14 + $0xf0] sm:$0xff]
    %v706 = vld [vmem:[%s14 + $0xf8] sm:$0xff]
    %v707 = vld [vmem:[%s15] sm:$0x3]
    %v709 = vlaneseq
    %v710 = vshrl.u32 %v709, 7
    %v711 = vsub.s32 0, %v710
    %v712 = vrot.slane %v707, %v711
    %v713 = vlaneseq
    %v714 = vshrl.u32 %v713, 7
    %v715 = vsub.s32 1, %v714
    %v716 = vrot.slane %v707, %v715
    %719 = vmatprep.subr.mxu0 %v706
    %720 = vmatpush1.msra.mxu0 %v705
    %721 = vmatprep.subr.mxu0 %v704
    %722 = vmatpush1.msra.mxu0 %v703
    %723 = vmatprep.subr.mxu0 %v702
    %724 = vmatpush1.msra.mxu0 %v701
    %725 = vmatprep.subr.mxu0 %v700
    %726 = vmatpush1.msra.mxu0 %v699
    %727 = vmatprep.subr.mxu0 %v698
    %728 = vmatpush1.msra.mxu0 %v697
    %729 = vmatprep.subr.mxu0 %v696
    %730 = vmatpush1.msra.mxu0 %v695
    %731 = vmatprep.subr.mxu0 %v694
    %732 = vmatpush1.msra.mxu0 %v693
    %733 = vmatprep.subr.mxu0 %v692
    %734 = vmatpush1.msra.mxu0 %v691
    %735 = vmatprep.subr.mxu0 %v690
    %736 = vmatpush1.msra.mxu0 %v689
    %737 = vmatprep.subr.mxu0 %v688
    %738 = vmatpush1.msra.mxu0 %v687
    %739 = vmatprep.subr.mxu0 %v686
    %740 = vmatpush1.msra.mxu0 %v685
    %741 = vmatprep.subr.mxu0 %v684
    %742 = vmatpush1.msra.mxu0 %v683
    %743 = vmatprep.subr.mxu0 %v682
    %744 = vmatpush1.msra.mxu0 %v681
    %745 = vmatprep.subr.mxu0 %v680
    %746 = vmatpush1.msra.mxu0 %v679
    %747 = vmatprep.subr.mxu0 %v678
    %748 = vmatpush1.msra.mxu0 %v677
    %749 = vmatprep.subr.mxu0 %v676
    %750 = vmatpush1.msra.mxu0 %v675
    %751 = vmatprep.subr.mxu0 0.0
    %752 = vmatpush2.msra.mxu0 0.0
    %753 = vmatprep.subr.mxu0 0.0
    %754 = vmatpush2.msra.mxu0 0.0
    %755 = vmatprep.subr.mxu0 0.0
    %756 = vmatpush2.msra.mxu0 0.0
    %757 = vmatprep.subr.mxu0 0.0
    %758 = vmatpush2.msra.mxu0 0.0
    %759 = vmatprep.subr.mxu0 0.0
    %760 = vmatpush2.msra.mxu0 0.0
    %761 = vmatprep.subr.mxu0 0.0
    %762 = vmatpush2.msra.mxu0 0.0
    %763 = vmatprep.subr.mxu0 0.0
    %764 = vmatpush2.msra.mxu0 0.0
    %765 = vmatprep.subr.mxu0 0.0
    %766 = vmatpush2.msra.mxu0 0.0
    %767 = vmatprep.subr.mxu0 0.0
    %768 = vmatpush2.msra.mxu0 0.0
    %769 = vmatprep.subr.mxu0 0.0
    %770 = vmatpush2.msra.mxu0 0.0
    %771 = vmatprep.subr.mxu0 0.0
    %772 = vmatpush2.msra.mxu0 0.0
    %773 = vmatprep.subr.mxu0 0.0
    %774 = vmatpush2.msra.mxu0 0.0
    %775 = vmatprep.subr.mxu0 0.0
    %776 = vmatpush2.msra.mxu0 0.0
    %777 = vmatprep.subr.mxu0 0.0
    %778 = vmatpush2.msra.mxu0 0.0
    %779 = vmatprep.subr.mxu0 0.0
    %780 = vmatpush2.msra.mxu0 0.0
    %781 = vmatprep.subr.mxu0 0.0
    %782 = vmatpush2.msra.mxu0 0.0
    %783 = vmatprep.mubr.f32.mxu0 0.0
    %784 = vmatmul.mubr.f32.gmra.mxu0 %v672
    %v785 = vpop.f32.mrf.mxu0
    %v786 = vadd.f32 %v712, %v785
    %v787 = vpop.f32.mrf.mxu0
    %v788 = vadd.f32 %v716, %v787
    %789 = vdwg.mxu0
    %v790 = vmax.f32 %v786, 0.0
    %v791 = vmax.f32 %v788, 0.0
    %v792 = vld [vmem:[%s16] sm:$0xff]
    %v793 = vld [vmem:[%s16 + $0x8] sm:$0xff]
    %v794 = vld [vmem:[%s16 + $0x10] sm:$0xff]
    %v795 = vld [vmem:[%s16 + $0x18] sm:$0xff]
    %v796 = vld [vmem:[%s16 + $0x20] sm:$0xff]
    %v797 = vld [vmem:[%s16 + $0x28] sm:$0xff]
    %v798 = vld [vmem:[%s16 + $0x30] sm:$0xff]
    %v799 = vld [vmem:[%s16 + $0x38] sm:$0xff]
    %v800 = vld [vmem:[%s16 + $0x40] sm:$0xff]
    %v801 = vld [vmem:[%s16 + $0x48] sm:$0xff]
    %v802 = vld [vmem:[%s16 + $0x50] sm:$0xff]
    %v803 = vld [vmem:[%s16 + $0x58] sm:$0xff]
    %v804 = vld [vmem:[%s16 + $0x60] sm:$0xff]
    %v805 = vld [vmem:[%s16 + $0x68] sm:$0xff]
    %v806 = vld [vmem:[%s16 + $0x70] sm:$0xff]
    %v807 = vld [vmem:[%s16 + $0x78] sm:$0xff]
    %v808 = vld [vmem:[%s16 + $0x80] sm:$0xff]
    %v809 = vld [vmem:[%s16 + $0x88] sm:$0xff]
    %v810 = vld [vmem:[%s16 + $0x90] sm:$0xff]
    %v811 = vld [vmem:[%s16 + $0x98] sm:$0xff]
    %v812 = vld [vmem:[%s16 + $0xa0] sm:$0xff]
    %v813 = vld [vmem:[%s16 + $0xa8] sm:$0xff]
    %v814 = vld [vmem:[%s16 + $0xb0] sm:$0xff]
    %v815 = vld [vmem:[%s16 + $0xb8] sm:$0xff]
    %v816 = vld [vmem:[%s16 + $0xc0] sm:$0xff]
    %v817 = vld [vmem:[%s16 + $0xc8] sm:$0xff]
    %v818 = vld [vmem:[%s16 + $0xd0] sm:$0xff]
    %v819 = vld [vmem:[%s16 + $0xd8] sm:$0xff]
    %v820 = vld [vmem:[%s16 + $0xe0] sm:$0xff]
    %v821 = vld [vmem:[%s16 + $0xe8] sm:$0xff]
    %v822 = vld [vmem:[%s16 + $0xf0] sm:$0xff]
    %v823 = vld [vmem:[%s16 + $0xf8] sm:$0xff]
    %v824 = vld [vmem:[%s16 + $0x100] sm:$0xff]
    %v825 = vld [vmem:[%s16 + $0x108] sm:$0xff]
    %v826 = vld [vmem:[%s16 + $0x110] sm:$0xff]
    %v827 = vld [vmem:[%s16 + $0x118] sm:$0xff]
    %v828 = vld [vmem:[%s17] sm:$0x3]
    %v830 = vlaneseq
    %v831 = vshrl.u32 %v830, 7
    %v832 = vsub.s32 0, %v831
    %v833 = vrot.slane %v828, %v832
    %v834 = vlaneseq
    %v835 = vshrl.u32 %v834, 7
    %v836 = vsub.s32 1, %v835
    %v837 = vrot.slane %v828, %v836
    %v841 = vsel %vm228, %v791, 0
    %843 = vmatprep.subr.mxu0 %v823
    %844 = vmatpush1.msra.mxu0 %v822
    %845 = vmatprep.subr.mxu0 %v821
    %846 = vmatpush1.msra.mxu0 %v820
    %847 = vmatprep.subr.mxu0 %v819
    %848 = vmatpush1.msra.mxu0 %v818
    %849 = vmatprep.subr.mxu0 %v817
    %850 = vmatpush1.msra.mxu0 %v816
    %851 = vmatprep.subr.mxu0 %v815
    %852 = vmatpush1.msra.mxu0 %v814
    %853 = vmatprep.subr.mxu0 %v813
    %854 = vmatpush1.msra.mxu0 %v812
    %855 = vmatprep.subr.mxu0 %v811
    %856 = vmatpush1.msra.mxu0 %v810
    %857 = vmatprep.subr.mxu0 %v809
    %858 = vmatpush1.msra.mxu0 %v808
    %859 = vmatprep.subr.mxu0 %v807
    %860 = vmatpush1.msra.mxu0 %v806
    %861 = vmatprep.subr.mxu0 %v805
    %862 = vmatpush1.msra.mxu0 %v804
    %863 = vmatprep.subr.mxu0 %v803
    %864 = vmatpush1.msra.mxu0 %v802
    %865 = vmatprep.subr.mxu0 %v801
    %866 = vmatpush1.msra.mxu0 %v800
    %867 = vmatprep.subr.mxu0 %v799
    %868 = vmatpush1.msra.mxu0 %v798
    %869 = vmatprep.subr.mxu0 %v797
    %870 = vmatpush1.msra.mxu0 %v796
    %871 = vmatprep.subr.mxu0 %v795
    %872 = vmatpush1.msra.mxu0 %v794
    %873 = vmatprep.subr.mxu0 %v793
    %874 = vmatpush1.msra.mxu0 %v792
    %875 = vmatprep.subr.mxu0 0.0
    %876 = vmatpush2.msra.mxu0 0.0
    %877 = vmatprep.subr.mxu0 0.0
    %878 = vmatpush2.msra.mxu0 0.0
    %879 = vmatprep.subr.mxu0 0.0
    %880 = vmatpush2.msra.mxu0 0.0
    %881 = vmatprep.subr.mxu0 0.0
    %882 = vmatpush2.msra.mxu0 0.0
    %883 = vmatprep.subr.mxu0 0.0
    %884 = vmatpush2.msra.mxu0 0.0
    %885 = vmatprep.subr.mxu0 0.0
    %886 = vmatpush2.msra.mxu0 0.0
    %887 = vmatprep.subr.mxu0 0.0
    %888 = vmatpush2.msra.mxu0 0.0
    %889 = vmatprep.subr.mxu0 0.0
    %890 = vmatpush2.msra.mxu0 0.0
    %891 = vmatprep.subr.mxu0 0.0
    %892 = vmatpush2.msra.mxu0 0.0
    %893 = vmatprep.subr.mxu0 0.0
    %894 = vmatpush2.msra.mxu0 0.0
    %895 = vmatprep.subr.mxu0 0.0
    %896 = vmatpush2.msra.mxu0 0.0
    %897 = vmatprep.subr.mxu0 0.0
    %898 = vmatpush2.msra.mxu0 0.0
    %899 = vmatprep.subr.mxu0 0.0
    %900 = vmatpush2.msra.mxu0 0.0
    %901 = vmatprep.subr.mxu0 0.0
    %902 = vmatpush2.msra.mxu0 0.0
    %903 = vmatprep.subr.mxu0 %v827
    %904 = vmatpush2.msra.mxu0 %v826
    %905 = vmatprep.subr.mxu0 %v825
    %906 = vmatpush2.msra.mxu0 %v824
    %907 = vmatprep.mubr.f32.mxu0 %v841
    %908 = vmatmul.mubr.f32.gmra.mxu0 %v790
    %v909 = vpop.f32.mrf.mxu0
    %v910 = vadd.f32 %v833, %v909
    %v911 = vpop.f32.mrf.mxu0
    %v912 = vadd.f32 %v837, %v911
    %913 = vdwg.mxu0
    %v914 = vtanh.pop %v910
    %v915 = vtanh.pop %v912
    %916 = vst [vmem:[%s18] sm:$0xff] %v914
    %917 = vst.msk [vmem:[%s18 + $0x8] sm:$0xff] %vm126, %v915
    // Predicated region
    $region74: #{forward.1} parent=1 // pred_check
      _
    $region75: #{forward.1} parent=1 // pred_check_branch
      %919 = sbr.rel (0) target = $region77
    $region76: #{forward.1} parent=1 // pred_region
      _
    $region77: #{forward.1} parent=1 // pred_fallthru
      _
    // Predicated region
    $region78: #{forward.1} parent=1 // pred_check
      _
    $region79: #{forward.1} parent=1 // pred_check_branch
      %921 = sbr.rel (0) target = $region81
    $region80: #{forward.1} parent=1 // pred_region
      %s923 = ssub.s32 128, 128
      %924 = vsyncadd [#allocation3], %s923
      %s926 = sshll.u32 [#allocation2], 4
      %s927 = int_to_ptr.vmem [resolvable:$true] %s926
      %929 = dma.vmem_to_hbm [thread:$0]  %s927, 128, %s19, [#allocation3]
    $region81: #{forward.1} parent=1 // pred_fallthru
      _
    // Predicated region
    $region82: #{forward.1} parent=1 // pred_check
      _
    $region83: #{forward.1} parent=1 // pred_check_branch
      %931 = sbr.rel (0) target = $region85
    $region84: #{forward.1} parent=1 // pred_region
      %s933 = ssub.s32 128, 128
      %934 = vsyncadd [#allocation5], %s933
      %s936 = sshll.u32 [#allocation4], 4
      %s937 = int_to_ptr.vmem [resolvable:$true] %s936
      %939 = dma.vmem_to_hbm [thread:$0]  %s937, 128, %s20, [#allocation5]
    $region85: #{forward.1} parent=1 // pred_fallthru
      _
    // Predicated region
    $region86: #{forward.1} parent=1 // pred_check
      _
    $region87: #{forward.1} parent=1 // pred_check_branch
      %941 = sbr.rel (0) target = $region89
    $region88: #{forward.1} parent=1 // pred_region
      _
    $region89: #{forward.1} parent=1 // pred_fallthru
      _
    // Predicated region
    $region90: #{forward.1} parent=1 // pred_check
      _
    $region91: #{forward.1} parent=1 // pred_check_branch
      %943 = sbr.rel (0) target = $region93
    $region92: #{forward.1} parent=1 // pred_region
      %944 = dma.done [#allocation3], 128
    $region93: #{forward.1} parent=1 // pred_fallthru
      _
    // Predicated region
    $region94: #{forward.1} parent=1 // pred_check
      _
    $region95: #{forward.1} parent=1 // pred_check_branch
      %946 = sbr.rel (0) target = $region97
    $region96: #{forward.1} parent=1 // pred_region
      %947 = dma.done [#allocation5], 128
    $region97: #{forward.1} parent=1 // pred_fallthru
      _
    %948 = vsyncpa [#allocation3], 1
    %949 = vsyncpa [#allocation5], 1

</llo_original>
